<compile_context>
chip_gen: v7x
topology: tpu7x:2x2x1
jax: 0.10.0
libtpu: 0.0.40
codegen_flags: <defaults>
</compile_context>

<pallas_src>
import functools

import jax
import jax.numpy as jnp
from jax.experimental import pallas as pl
from jax.experimental.pallas import tpu as pltpu


def _round_up(x, m):
    return (x + m - 1) // m * m


def _param_layout(features, actions, hidden):
    """Row/col placement of each weight/bias inside the packed (rows, lanes) slab.

    Every operand starts at an 8-aligned sublane offset so the in-kernel static
    ref slices are tile-aligned views (no relayout copies).
    """
    h2 = hidden // 2
    entries = [
        ("w1_s", features, hidden),   # state part of layer-1 weight
        ("w1_a", actions, hidden),    # action part of layer-1 weight
        ("b1", 1, hidden),
        ("w2", hidden, h2),
        ("b2", 1, h2),
        ("w3", h2, features),
        ("b3", 1, features),
    ]
    layout = {}
    off = 0
    max_cols = 0
    for name, rows, cols in entries:
        layout[name] = (off, rows, cols)
        off += _round_up(rows, 8)
        max_cols = max(max_cols, cols)
    total_rows = _round_up(off, 8)
    lanes = _round_up(max_cols, 128)
    return layout, total_rows, lanes


def pack_params(params, features, actions, hidden):
    """Pack the parameter dict into a single (rows, 128) f32 slab (one DMA)."""
    layout, rows, lanes = _param_layout(features, actions, hidden)
    slab = jnp.zeros((rows, lanes), jnp.float32)
    for name, (off, r, c) in layout.items():
        slab = slab.at[off:off + r, :c].set(params[name].astype(jnp.float32))
    return slab


def _mlp_residual_kernel(state_ref, action_ref, slab_ref, out_ref, *,
                         layout, actions):
    # state:  (N, F)   action: (N, A)   slab: (rows, 128) packed params
    def w(name):
        off, r, c = layout[name]
        return slab_ref[off:off + r, 0:c]   # static, tile-aligned view load

    s = state_ref[...]
    a = action_ref[...]

    # ---- Layer 1: h1 = s @ w1_s + a @ w1_a + b1 (no concat) -----------------
    # State part on the MXU.
    h1 = jnp.dot(s, w("w1_s"), preferred_element_type=jnp.float32)
    # Action part: K = A is tiny, so do A rank-1 VPU updates instead of padding
    # a 2-deep contraction through the MXU.
    if actions <= 8:
        w1a = w("w1_a")                                  # (A, H)
        for j in range(actions):                         # unrolled, A is static
            h1 = h1 + a[:, j:j + 1] * w1a[j:j + 1, :]
    else:
        h1 = h1 + jnp.dot(a, w("w1_a"), preferred_element_type=jnp.float32)
    h1 = jnp.maximum(h1 + w("b1"), 0.0)

    # ---- Layer 2 -------------------------------------------------------------
    h2 = jnp.dot(h1, w("w2"), preferred_element_type=jnp.float32) + w("b2")
    h2 = jnp.maximum(h2, 0.0)

    # ---- Layer 3 + residual, one fused store ---------------------------------
    y = jnp.dot(h2, w("w3"), preferred_element_type=jnp.float32) + w("b3")
    out_ref[...] = (y + s).astype(out_ref.dtype)


def make_model_forward(features, actions, hidden):
    """Build the jitted forward fn for given static dims (F, A, H)."""
    layout, _, _ = _param_layout(features, actions, hidden)
    kernel = functools.partial(_mlp_residual_kernel,
                               layout=layout, actions=actions)

    @jax.jit
    def model_forward(state, action, param_slab):
        # state: (B, R, F), action: (B, R, A) -> (B, R, F)
        B, R, F = state.shape
        A = action.shape[-1]
        N = B * R

        state_flat = state.reshape(N, F)     # zero-copy, row-major
        action_flat = action.reshape(N, A)   # zero-copy, row-major

        vmem = pl.BlockSpec(memory_space=pltpu.MemorySpace.VMEM)
        out = pl.pallas_call(
            kernel,
            out_shape=jax.ShapeDtypeStruct((N, F), jnp.float32),
            in_specs=[vmem, vmem, vmem],
            out_specs=vmem,
        )(state_flat, action_flat, param_slab)

        return out.reshape(B, R, F)

    return model_forward


def init_params(key, features, actions, hidden):
    """Deterministic parameter init mirroring the PyTorch module.

    Weights stored as (in, out) so the kernel computes x @ W + b; layer-1's
    weight is split along its input dim into the state part (F, H) and action
    part (A, H) — mathematically identical to one (F+A, H) matrix applied to
    concat([state, action], -1).
    """
    fin = features + actions
    h = hidden
    h2 = hidden // 2
    keys = jax.random.split(key, 6)

    def xavier(k, nin, nout):
        limit = jnp.sqrt(6.0 / (nin + nout))
        return jax.random.uniform(k, (nin, nout), jnp.float32, -limit, limit)

    def bias(k, nin, nout):
        bound = 1.0 / jnp.sqrt(nin)
        return jax.random.uniform(k, (1, nout), jnp.float32, -bound, bound)

    w1 = xavier(keys[0], fin, h)           # single (F+A, H) xavier matrix ...
    w1_s = w1[:features, :]                # ... split once, outside hot path
    w1_a = w1[features:, :]
    b1 = bias(keys[1], fin, h)
    w2 = xavier(keys[2], h, h2)
    b2 = bias(keys[3], h, h2)
    w3 = jax.random.uniform(keys[4], (h2, features), jnp.float32, -0.003, 0.003)
    b3 = bias(keys[5], h2, features)
    return {"w1_s": w1_s, "w1_a": w1_a, "b1": b1,
            "w2": w2, "b2": b2, "w3": w3, "b3": b3}


def reference_forward(state, action, params):
    """Pure-jnp reference (uses the unpacked param dict, not the slab)."""
    B, R, F = state.shape
    A = action.shape[-1]
    N = B * R
    s = state.reshape(N, F)
    a = action.reshape(N, A)
    x = jnp.concatenate([s, a], axis=1)
    w1 = jnp.concatenate([params["w1_s"], params["w1_a"]], axis=0)
    h1 = jnp.maximum(x @ w1 + params["b1"], 0.0)
    h2 = jnp.maximum(h1 @ params["w2"] + params["b2"], 0.0)
    y = h2 @ params["w3"] + params["b3"]
    return (y + s).reshape(B, R, F)


if __name__ == "__main__":
    # input_shape = (robots=4, features=16); outputs_count = 8 -> actions = 2
    B, R, F, A = 2, 4, 16, 2
    HIDDEN = 32  # hidden_count (kept small); second layer = HIDDEN // 2

    key = jax.random.PRNGKey(0)
    k_state, k_action, k_params = jax.random.split(key, 3)

    state = jax.random.normal(k_state, (B, R, F), jnp.float32)
    action = jax.random.normal(k_action, (B, R, A), jnp.float32)
    params = init_params(k_params, F, A, HIDDEN)
    param_slab = pack_params(params, F, A, HIDDEN)   # one-time, outside hot path

    model_forward = make_model_forward(F, A, HIDDEN)

    out = model_forward(state, action, param_slab)
    out = jax.block_until_ready(out)

    ref = reference_forward(state, action, params)
    assert out.shape == (B, R, F)
    assert jnp.allclose(out, ref, atol=1e-5, rtol=1e-5)

    print("KERNEL_OK")
</pallas_src>

<mosaic_0001>
module attributes {stable_mosaic.version = 11 : i64} {
  func.func @_mlp_residual_kernel(%arg0: memref<8x16xf32, #tpu.memory_space<vmem>>, %arg1: memref<8x2xf32, #tpu.memory_space<vmem>>, %arg2: memref<96x128xf32, #tpu.memory_space<vmem>>, %arg3: memref<8x16xf32, #tpu.memory_space<vmem>>) attributes {dimension_semantics = [], scalar_prefetch = 0 : i64, scratch_operands = 0 : i64, tpu.core_type = #tpu.core_type<tc>} {
    %c0 = arith.constant 0 : index
    %c0_0 = arith.constant 0 : index
    %0 = vector.load %arg0[%c0, %c0_0] : memref<8x16xf32, #tpu.memory_space<vmem>>, vector<8x16xf32>
    %c0_1 = arith.constant 0 : index
    %c0_2 = arith.constant 0 : index
    %1 = vector.load %arg1[%c0_1, %c0_2] : memref<8x2xf32, #tpu.memory_space<vmem>>, vector<8x2xf32>
    %c0_3 = arith.constant 0 : index
    %c0_4 = arith.constant 0 : index
    %2 = vector.load %arg2[%c0_3, %c0_4] : memref<96x128xf32, #tpu.memory_space<vmem>>, vector<16x32xf32>
    %cst = arith.constant dense<0.000000e+00> : vector<8x32xf32>
    %3 = tpu.matmul %0, %2, %cst {dimension_numbers = #tpu.dot_dimension_numbers<[1], [0], [0], [1], [0, 0, 1, 1], [], []>} : vector<8x16xf32>, vector<16x32xf32>, vector<8x32xf32> -> vector<8x32xf32>
    %c16 = arith.constant 16 : index
    %c0_5 = arith.constant 0 : index
    %4 = vector.load %arg2[%c16, %c0_5] : memref<96x128xf32, #tpu.memory_space<vmem>>, vector<2x32xf32>
    %5 = vector.extract_strided_slice %1 {offsets = [0, 0], sizes = [8, 1], strides = [1, 1]} : vector<8x2xf32> to vector<8x1xf32>
    %6 = vector.extract_strided_slice %4 {offsets = [0, 0], sizes = [1, 32], strides = [1, 1]} : vector<2x32xf32> to vector<1x32xf32>
    %7 = vector.broadcast %5 : vector<8x1xf32> to vector<8x32xf32>
    %8 = vector.broadcast %6 : vector<1x32xf32> to vector<8x32xf32>
    %9 = arith.mulf %7, %8 : vector<8x32xf32>
    %10 = arith.addf %3, %9 : vector<8x32xf32>
    %11 = vector.extract_strided_slice %1 {offsets = [0, 1], sizes = [8, 1], strides = [1, 1]} : vector<8x2xf32> to vector<8x1xf32>
    %12 = vector.extract_strided_slice %4 {offsets = [1, 0], sizes = [1, 32], strides = [1, 1]} : vector<2x32xf32> to vector<1x32xf32>
    %13 = vector.broadcast %11 : vector<8x1xf32> to vector<8x32xf32>
    %14 = vector.broadcast %12 : vector<1x32xf32> to vector<8x32xf32>
    %15 = arith.mulf %13, %14 : vector<8x32xf32>
    %16 = arith.addf %10, %15 : vector<8x32xf32>
    %c24 = arith.constant 24 : index
    %c0_6 = arith.constant 0 : index
    %17 = vector.load %arg2[%c24, %c0_6] : memref<96x128xf32, #tpu.memory_space<vmem>>, vector<1x32xf32>
    %18 = vector.broadcast %17 : vector<1x32xf32> to vector<8x32xf32>
    %19 = arith.addf %16, %18 : vector<8x32xf32>
    %cst_7 = arith.constant 0.000000e+00 : f32
    %20 = vector.broadcast %cst_7 : f32 to vector<8x32xf32>
    %21 = arith.maximumf %19, %20 : vector<8x32xf32>
    %c32 = arith.constant 32 : index
    %c0_8 = arith.constant 0 : index
    %22 = vector.load %arg2[%c32, %c0_8] : memref<96x128xf32, #tpu.memory_space<vmem>>, vector<32x16xf32>
    %cst_9 = arith.constant dense<0.000000e+00> : vector<8x16xf32>
    %23 = tpu.matmul %21, %22, %cst_9 {dimension_numbers = #tpu.dot_dimension_numbers<[1], [0], [0], [1], [0, 0, 1, 1], [], []>} : vector<8x32xf32>, vector<32x16xf32>, vector<8x16xf32> -> vector<8x16xf32>
    %c64 = arith.constant 64 : index
    %c0_10 = arith.constant 0 : index
    %24 = vector.load %arg2[%c64, %c0_10] : memref<96x128xf32, #tpu.memory_space<vmem>>, vector<1x16xf32>
    %25 = vector.broadcast %24 : vector<1x16xf32> to vector<8x16xf32>
    %26 = arith.addf %23, %25 : vector<8x16xf32>
    %cst_11 = arith.constant 0.000000e+00 : f32
    %27 = vector.broadcast %cst_11 : f32 to vector<8x16xf32>
    %28 = arith.maximumf %26, %27 : vector<8x16xf32>
    %c72 = arith.constant 72 : index
    %c0_12 = arith.constant 0 : index
    %29 = vector.load %arg2[%c72, %c0_12] : memref<96x128xf32, #tpu.memory_space<vmem>>, vector<16x16xf32>
    %cst_13 = arith.constant dense<0.000000e+00> : vector<8x16xf32>
    %30 = tpu.matmul %28, %29, %cst_13 {dimension_numbers = #tpu.dot_dimension_numbers<[1], [0], [0], [1], [0, 0, 1, 1], [], []>} : vector<8x16xf32>, vector<16x16xf32>, vector<8x16xf32> -> vector<8x16xf32>
    %c88 = arith.constant 88 : index
    %c0_14 = arith.constant 0 : index
    %31 = vector.load %arg2[%c88, %c0_14] : memref<96x128xf32, #tpu.memory_space<vmem>>, vector<1x16xf32>
    %32 = vector.broadcast %31 : vector<1x16xf32> to vector<8x16xf32>
    %33 = arith.addf %30, %32 : vector<8x16xf32>
    %34 = arith.addf %33, %0 : vector<8x16xf32>
    %c0_15 = arith.constant 0 : index
    %c0_16 = arith.constant 0 : index
    %35 = vector.load %arg3[%c0_15, %c0_16] : memref<8x16xf32, #tpu.memory_space<vmem>>, vector<8x16xf32>
    tpu.vector_store %arg3[%c0_15, %c0_16], %34 {strides = array<i32>} : memref<8x16xf32, #tpu.memory_space<vmem>>, vector<8x16xf32>,
    return
  }
}

</mosaic_0001>

<llo_original>
// kernel: model_forward.1
$region0: #{model_forward.1}
  #allocation0 [shape = 'u32[]', space=smem, size = 0x4, offset = 0x4, fixed_abs, tag = 'smem constant byte address 0x4 - core index']
  #allocation1 [shape = 'u32[144,128]{1,0:T(1,128)}', space=vmem, size = 0x12000, scoped, tag = 'internal scratch']
  %s0 = inlined_call_operand.vmem [shape: f32[8,16], index: 0, kind: input, shape index: {}]
  %s1 = inlined_call_operand.vmem [shape: f32[8,2], index: 1, kind: input, shape index: {}]
  %s2 = inlined_call_operand.hbm [shape: f32[96,128], index: 2, kind: input, shape index: {}]
  %s3 = inlined_call_operand.hbm [shape: f32[8,16], index: 3, kind: output, shape index: {}]
  %s4 = sld [smem:[#allocation0]]
  $region26: #{model_forward.1} parent=0
    _
  %s6 = ssub.s32 1, %s4
  %s7 = scalar_select 0, %s6, %s4
  $region1: #{model_forward.1} parent=0
    #allocation2 [shape = 'u8[49152]{0}', space=vmem, size = 0xc000, scoped, tag = 'input window, operand 2, single buffered']
    #allocation3 [shape = 's32[1]{0}', space=sflag, size = 0x4, scoped, tag = 'scoped memory for model_forward.1']
    #allocation4 [shape = 's32[1]{0}', space=sflag, size = 0x4, scoped, tag = 'scoped memory for model_forward.1']
    #allocation5 [shape = 'u8[4096]{0}', space=vmem, size = 0x1000, scoped, tag = 'output window, operand 0, single buffered']
    %8 = vsyncpa [#allocation3], 0
    %9 = vsyncpa [#allocation4], 0
    // Predicated region
    $region2: #{model_forward.1} parent=1 // pred_check
      _
    $region3: #{model_forward.1} parent=1 // pred_check_branch
      %11 = sbr.rel (0) target = $region5
    $region4: #{model_forward.1} parent=1 // pred_region
      _
    $region5: #{model_forward.1} parent=1 // pred_fallthru
      _
    // Predicated region
    $region6: #{model_forward.1} parent=1 // pred_check
      _
    $region7: #{model_forward.1} parent=1 // pred_check_branch
      %13 = sbr.rel (0) target = $region9
    $region8: #{model_forward.1} parent=1 // pred_region
      _
    $region9: #{model_forward.1} parent=1 // pred_fallthru
      _
    // Predicated region
    $region10: #{model_forward.1} parent=1 // pred_check
      _
    $region11: #{model_forward.1} parent=1 // pred_check_branch
      %15 = sbr.rel (0) target = $region13
    $region12: #{model_forward.1} parent=1 // pred_region
      %s17 = ssub.s32 1536, 1536
      %18 = vsyncadd [#allocation3], %s17
      %s19 = sshll.u32 [#allocation2], 4
      %s20 = int_to_ptr.vmem [resolvable:$true] %s19
      %25 = dma.hbm_to_vmem [thread:$0]  %s2, 1536, %s20, [#allocation3], 128, 128, 8
    $region13: #{model_forward.1} parent=1 // pred_fallthru
      _
    // Predicated region
    $region14: #{model_forward.1} parent=1 // pred_check
      _
    $region15: #{model_forward.1} parent=1 // pred_check_branch
      %27 = sbr.rel (0) target = $region17
    $region16: #{model_forward.1} parent=1 // pred_region
      %28 = dma.done [#allocation3], 1536
    $region17: #{model_forward.1} parent=1 // pred_fallthru
      _
    %v29 = vld [vmem:[%s0] sm:$0xff]
    %v30 = vld [vmem:[%s1] sm:$0xff]
    %v31 = vld [vmem:[#allocation2] sm:$0xff]
    %v32 = vld [vmem:[#allocation2 + $0x8] sm:$0xff]
    %v33 = vld [vmem:[#allocation2 + $0x10] sm:$0x3]
    %35 = vset.pattern.permute.xlu0 0
    %36 = vperm.xlu0 %35, %v30
    %v37 = vpop.permute.xlu0 %36
    %v39 = vlaneseq
    %v40 = vshrl.u32 %v39, 7
    %v41 = vsub.s32 0, %v40
    %v42 = vrot.slane %v33, %v41
    %v43 = vmul.f32 %v37, %v42
    %vm44 = vcmask 130048
    %v46 = vsel %vm44, %v29, 0
    %48 = vmatprep.subr.mxu0 0.0
    %49 = vmatpush1.msra.mxu0 %v31
    %50 = vmatprep.subr.mxu0 0.0
    %51 = vmatpush1.msra.mxu0 %v32
    %52 = vmatprep.subr.mxu0 0.0
    %53 = vmatpush1.msra.mxu0 0.0
    %54 = vmatprep.subr.mxu0 0.0
    %55 = vmatpush1.msra.mxu0 0.0
    %56 = vmatprep.subr.mxu0 0.0
    %57 = vmatpush1.msra.mxu0 0.0
    %58 = vmatprep.subr.mxu0 0.0
    %59 = vmatpush1.msra.mxu0 0.0
    %60 = vmatprep.subr.mxu0 0.0
    %61 = vmatpush1.msra.mxu0 0.0
    %62 = vmatprep.subr.mxu0 0.0
    %63 = vmatpush1.msra.mxu0 0.0
    %64 = vmatprep.subr.mxu0 0.0
    %65 = vmatpush1.msra.mxu0 0.0
    %66 = vmatprep.subr.mxu0 0.0
    %67 = vmatpush1.msra.mxu0 0.0
    %68 = vmatprep.subr.mxu0 0.0
    %69 = vmatpush1.msra.mxu0 0.0
    %70 = vmatprep.subr.mxu0 0.0
    %71 = vmatpush1.msra.mxu0 0.0
    %72 = vmatprep.subr.mxu0 0.0
    %73 = vmatpush1.msra.mxu0 0.0
    %74 = vmatprep.subr.mxu0 0.0
    %75 = vmatpush1.msra.mxu0 0.0
    %76 = vmatprep.subr.mxu0 0.0
    %77 = vmatpush1.msra.mxu0 0.0
    %78 = vmatprep.subr.mxu0 0.0
    %79 = vmatpush1.msra.mxu0 0.0
    %80 = vmatprep.subr.mxu0 0.0
    %81 = vmatpush1.msra.mxu0 0.0
    %82 = vmatprep.subr.mxu0 0.0
    %83 = vmatpush1.msra.mxu0 0.0
    %84 = vmatprep.subr.mxu0 0.0
    %85 = vmatpush1.msra.mxu0 0.0
    %86 = vmatprep.subr.mxu0 0.0
    %87 = vmatpush1.msra.mxu0 0.0
    %88 = vmatprep.subr.mxu0 0.0
    %89 = vmatpush1.msra.mxu0 0.0
    %90 = vmatprep.subr.mxu0 0.0
    %91 = vmatpush1.msra.mxu0 0.0
    %92 = vmatprep.subr.mxu0 0.0
    %93 = vmatpush1.msra.mxu0 0.0
    %94 = vmatprep.subr.mxu0 0.0
    %95 = vmatpush1.msra.mxu0 0.0
    %96 = vmatprep.subr.mxu0 0.0
    %97 = vmatpush1.msra.mxu0 0.0
    %98 = vmatprep.subr.mxu0 0.0
    %99 = vmatpush1.msra.mxu0 0.0
    %100 = vmatprep.subr.mxu0 0.0
    %101 = vmatpush1.msra.mxu0 0.0
    %102 = vmatprep.subr.mxu0 0.0
    %103 = vmatpush1.msra.mxu0 0.0
    %104 = vmatprep.subr.mxu0 0.0
    %105 = vmatpush1.msra.mxu0 0.0
    %106 = vmatprep.subr.mxu0 0.0
    %107 = vmatpush1.msra.mxu0 0.0
    %108 = vmatprep.subr.mxu0 0.0
    %109 = vmatpush1.msra.mxu0 0.0
    %110 = vmatprep.subr.mxu0 0.0
    %111 = vmatpush1.msra.mxu0 0.0
    %112 = vmatprep.mubr.f32.mxu0 0.0
    %113 = vmatmul.mubr.f32.gmra.mrb[0].mxu0 %v46
    %v114 = vpop.f32.mrb[0].mxu0
    %v115 = vadd.f32 %v43, %v114
    %v116 = vpop.f32.mrb[0].mxu0
    %117 = vdwg.mxu0
    %118 = vset.pattern.permute.xlu0 1
    %119 = vperm.xlu0 %118, %v30
    %v120 = vpop.permute.xlu0 %119
    %v122 = vlaneseq
    %v123 = vshrl.u32 %v122, 7
    %v124 = vsub.s32 1, %v123
    %v125 = vrot.slane %v33, %v124
    %v126 = vmul.f32 %v120, %v125
    %v127 = vadd.f32 %v115, %v126
    %v128 = vld [vmem:[#allocation2 + $0x18] sm:$0x1]
    %v129 = vlaneseq
    %v130 = vshrl.u32 %v129, 7
    %v131 = vsub.s32 0, %v130
    %v132 = vrot.slane %v128, %v131
    %v133 = vadd.f32 %v127, %v132
    %v134 = vmax.f32 %v133, 0.0
    %v135 = vld [vmem:[#allocation2 + $0x20] sm:$0xff]
    %v136 = vld [vmem:[#allocation2 + $0x28] sm:$0xff]
    %v137 = vld [vmem:[#allocation2 + $0x30] sm:$0xff]
    %v138 = vld [vmem:[#allocation2 + $0x38] sm:$0xff]
    %v139 = vld [vmem:[#allocation2 + $0x40] sm:$0x1]
    %v140 = vlaneseq
    %v141 = vshrl.u32 %v140, 7
    %v142 = vsub.s32 0, %v141
    %v143 = vrot.slane %v139, %v142
    %vm144 = vcmask 261120
    %v146 = vsel %vm144, %v134, 0
    %148 = vmatprep.subr.mxu0 0.0
    %149 = vmatpush1.msra.mxu0 %v135
    %150 = vmatprep.subr.mxu0 0.0
    %151 = vmatpush1.msra.mxu0 %v136
    %152 = vmatprep.subr.mxu0 0.0
    %153 = vmatpush1.msra.mxu0 %v137
    %154 = vmatprep.subr.mxu0 0.0
    %155 = vmatpush1.msra.mxu0 %v138
    %156 = vmatprep.subr.mxu0 0.0
    %157 = vmatpush1.msra.mxu0 0.0
    %158 = vmatprep.subr.mxu0 0.0
    %159 = vmatpush1.msra.mxu0 0.0
    %160 = vmatprep.subr.mxu0 0.0
    %161 = vmatpush1.msra.mxu0 0.0
    %162 = vmatprep.subr.mxu0 0.0
    %163 = vmatpush1.msra.mxu0 0.0
    %164 = vmatprep.subr.mxu0 0.0
    %165 = vmatpush1.msra.mxu0 0.0
    %166 = vmatprep.subr.mxu0 0.0
    %167 = vmatpush1.msra.mxu0 0.0
    %168 = vmatprep.subr.mxu0 0.0
    %169 = vmatpush1.msra.mxu0 0.0
    %170 = vmatprep.subr.mxu0 0.0
    %171 = vmatpush1.msra.mxu0 0.0
    %172 = vmatprep.subr.mxu0 0.0
    %173 = vmatpush1.msra.mxu0 0.0
    %174 = vmatprep.subr.mxu0 0.0
    %175 = vmatpush1.msra.mxu0 0.0
    %176 = vmatprep.subr.mxu0 0.0
    %177 = vmatpush1.msra.mxu0 0.0
    %178 = vmatprep.subr.mxu0 0.0
    %179 = vmatpush1.msra.mxu0 0.0
    %180 = vmatprep.subr.mxu0 0.0
    %181 = vmatpush1.msra.mxu0 0.0
    %182 = vmatprep.subr.mxu0 0.0
    %183 = vmatpush1.msra.mxu0 0.0
    %184 = vmatprep.subr.mxu0 0.0
    %185 = vmatpush1.msra.mxu0 0.0
    %186 = vmatprep.subr.mxu0 0.0
    %187 = vmatpush1.msra.mxu0 0.0
    %188 = vmatprep.subr.mxu0 0.0
    %189 = vmatpush1.msra.mxu0 0.0
    %190 = vmatprep.subr.mxu0 0.0
    %191 = vmatpush1.msra.mxu0 0.0
    %192 = vmatprep.subr.mxu0 0.0
    %193 = vmatpush1.msra.mxu0 0.0
    %194 = vmatprep.subr.mxu0 0.0
    %195 = vmatpush1.msra.mxu0 0.0
    %196 = vmatprep.subr.mxu0 0.0
    %197 = vmatpush1.msra.mxu0 0.0
    %198 = vmatprep.subr.mxu0 0.0
    %199 = vmatpush1.msra.mxu0 0.0
    %200 = vmatprep.subr.mxu0 0.0
    %201 = vmatpush1.msra.mxu0 0.0
    %202 = vmatprep.subr.mxu0 0.0
    %203 = vmatpush1.msra.mxu0 0.0
    %204 = vmatprep.subr.mxu0 0.0
    %205 = vmatpush1.msra.mxu0 0.0
    %206 = vmatprep.subr.mxu0 0.0
    %207 = vmatpush1.msra.mxu0 0.0
    %208 = vmatprep.subr.mxu0 0.0
    %209 = vmatpush1.msra.mxu0 0.0
    %210 = vmatprep.subr.mxu0 0.0
    %211 = vmatpush1.msra.mxu0 0.0
    %212 = vmatprep.mubr.f32.mxu0 0.0
    %213 = vmatmul.mubr.f32.gmra.mrb[0].mxu0 %v146
    %v214 = vpop.f32.mrb[0].mxu0
    %v215 = vadd.f32 %v143, %v214
    %v216 = vpop.f32.mrb[0].mxu0
    %217 = vdwg.mxu0
    %v218 = vmax.f32 %v215, 0.0
    %v219 = vld [vmem:[#allocation2 + $0x48] sm:$0xff]
    %v220 = vld [vmem:[#allocation2 + $0x50] sm:$0xff]
    %v221 = vld [vmem:[#allocation2 + $0x58] sm:$0x1]
    %v222 = vlaneseq
    %v223 = vshrl.u32 %v222, 7
    %v224 = vsub.s32 0, %v223
    %v225 = vrot.slane %v221, %v224
    %v227 = vsel %vm44, %v218, 0
    %229 = vmatprep.subr.mxu0 0.0
    %230 = vmatpush1.msra.mxu0 %v219
    %231 = vmatprep.subr.mxu0 0.0
    %232 = vmatpush1.msra.mxu0 %v220
    %233 = vmatprep.subr.mxu0 0.0
    %234 = vmatpush1.msra.mxu0 0.0
    %235 = vmatprep.subr.mxu0 0.0
    %236 = vmatpush1.msra.mxu0 0.0
    %237 = vmatprep.subr.mxu0 0.0
    %238 = vmatpush1.msra.mxu0 0.0
    %239 = vmatprep.subr.mxu0 0.0
    %240 = vmatpush1.msra.mxu0 0.0
    %241 = vmatprep.subr.mxu0 0.0
    %242 = vmatpush1.msra.mxu0 0.0
    %243 = vmatprep.subr.mxu0 0.0
    %244 = vmatpush1.msra.mxu0 0.0
    %245 = vmatprep.subr.mxu0 0.0
    %246 = vmatpush1.msra.mxu0 0.0
    %247 = vmatprep.subr.mxu0 0.0
    %248 = vmatpush1.msra.mxu0 0.0
    %249 = vmatprep.subr.mxu0 0.0
    %250 = vmatpush1.msra.mxu0 0.0
    %251 = vmatprep.subr.mxu0 0.0
    %252 = vmatpush1.msra.mxu0 0.0
    %253 = vmatprep.subr.mxu0 0.0
    %254 = vmatpush1.msra.mxu0 0.0
    %255 = vmatprep.subr.mxu0 0.0
    %256 = vmatpush1.msra.mxu0 0.0
    %257 = vmatprep.subr.mxu0 0.0
    %258 = vmatpush1.msra.mxu0 0.0
    %259 = vmatprep.subr.mxu0 0.0
    %260 = vmatpush1.msra.mxu0 0.0
    %261 = vmatprep.subr.mxu0 0.0
    %262 = vmatpush1.msra.mxu0 0.0
    %263 = vmatprep.subr.mxu0 0.0
    %264 = vmatpush1.msra.mxu0 0.0
    %265 = vmatprep.subr.mxu0 0.0
    %266 = vmatpush1.msra.mxu0 0.0
    %267 = vmatprep.subr.mxu0 0.0
    %268 = vmatpush1.msra.mxu0 0.0
    %269 = vmatprep.subr.mxu0 0.0
    %270 = vmatpush1.msra.mxu0 0.0
    %271 = vmatprep.subr.mxu0 0.0
    %272 = vmatpush1.msra.mxu0 0.0
    %273 = vmatprep.subr.mxu0 0.0
    %274 = vmatpush1.msra.mxu0 0.0
    %275 = vmatprep.subr.mxu0 0.0
    %276 = vmatpush1.msra.mxu0 0.0
    %277 = vmatprep.subr.mxu0 0.0
    %278 = vmatpush1.msra.mxu0 0.0
    %279 = vmatprep.subr.mxu0 0.0
    %280 = vmatpush1.msra.mxu0 0.0
    %281 = vmatprep.subr.mxu0 0.0
    %282 = vmatpush1.msra.mxu0 0.0
    %283 = vmatprep.subr.mxu0 0.0
    %284 = vmatpush1.msra.mxu0 0.0
    %285 = vmatprep.subr.mxu0 0.0
    %286 = vmatpush1.msra.mxu0 0.0
    %287 = vmatprep.subr.mxu0 0.0
    %288 = vmatpush1.msra.mxu0 0.0
    %289 = vmatprep.subr.mxu0 0.0
    %290 = vmatpush1.msra.mxu0 0.0
    %291 = vmatprep.subr.mxu0 0.0
    %292 = vmatpush1.msra.mxu0 0.0
    %293 = vmatprep.mubr.f32.mxu0 0.0
    %294 = vmatmul.mubr.f32.gmra.mrb[0].mxu0 %v227
    %v295 = vpop.f32.mrb[0].mxu0
    %v296 = vadd.f32 %v225, %v295
    %v297 = vpop.f32.mrb[0].mxu0
    %298 = vdwg.mxu0
    %v299 = vadd.f32 %v296, %v29
    %300 = vst.msk [vmem:[#allocation5] sm:$0xff] %vm44, %v299
    // Predicated region
    $region18: #{model_forward.1} parent=1 // pred_check
      _
    $region19: #{model_forward.1} parent=1 // pred_check_branch
      %302 = sbr.rel (0) target = $region21
    $region20: #{model_forward.1} parent=1 // pred_region
      %s304 = ssub.s32 128, 128
      %305 = vsyncadd [#allocation4], %s304
      %s307 = sshll.u32 [#allocation5], 4
      %s308 = int_to_ptr.vmem [resolvable:$true] %s307
      %310 = dma.vmem_to_hbm [thread:$0]  %s308, 128, %s3, [#allocation4]
    $region21: #{model_forward.1} parent=1 // pred_fallthru
      _
    // Predicated region
    $region22: #{model_forward.1} parent=1 // pred_check
      _
    $region23: #{model_forward.1} parent=1 // pred_check_branch
      %312 = sbr.rel (0) target = $region25
    $region24: #{model_forward.1} parent=1 // pred_region
      %313 = dma.done [#allocation4], 128
    $region25: #{model_forward.1} parent=1 // pred_fallthru
      _
    %314 = vsyncpa [#allocation3], 1
    %315 = vsyncpa [#allocation4], 1

</llo_original>
